<compile_context>
chip_gen: v7x
topology: tpu7x:2x2x1
jax: 0.10.0
libtpu: 0.0.40
codegen_flags: <defaults>
</compile_context>

<pallas_src>
import functools

import jax
import jax.numpy as jnp
from jax.experimental import pallas as pl
from jax.experimental.pallas import tpu as pltpu


def _complex_bn_kernel(xr_ref, xi_ref, par_ref, or_ref, oi_ref, *, eps,
                       inv_count):
    """Fused real+imag BatchNorm3d (training-mode) for one channel block.

    xr/xi : (N, tc, DHW) data blocks; stats reduce over axes (0, 2).
    par   : (tc, 4) f32 packed affine params [gamma_r, beta_r, gamma_i, beta_i].
    """
    p = par_ref[...].astype(jnp.float32)                       # (tc, 4)

    def bn(x_ref, o_ref, g, b):
        x = x_ref[...].astype(jnp.float32)                     # (N, tc, DHW)
        # Batch axis first (pure VALU vreg adds), then a single lane-axis
        # (XLU) reduce per channel group instead of N of them.
        s0 = jnp.sum(x, axis=0)                                # (tc, DHW)
        mean = (jnp.sum(s0, axis=1, keepdims=True) * inv_count)[None]  # (1,tc,1)
        xc = x - mean                                          # variance only
        sq0 = jnp.sum(xc * xc, axis=0)                         # (tc, DHW)
        var = (jnp.sum(sq0, axis=1, keepdims=True) * inv_count)[None]  # >= 0
        scale = jax.lax.rsqrt(var + eps) * g[None]             # (1, tc, 1)
        shift = b[None] - mean * scale                         # fold mean in
        # Emit: one load + one FMA + one store per element.
        o_ref[...] = (x * scale + shift).astype(o_ref.dtype)

    bn(xr_ref, or_ref, p[:, 0:1], p[:, 1:2])
    bn(xi_ref, oi_ref, p[:, 2:3], p[:, 3:4])


def _round_up(x, m):
    return ((x + m - 1) // m) * m


def _vmem_limit_bytes():
    """Scoped-VMEM limit ~ half of physical VMEM per TensorCore.

    128 MiB parts (v5e/v6e) -> 64 MiB scoped; 64 MiB parts (v7x) -> 32 MiB.
    Falls back to the v7x-conservative value if the hardware query fails.
    """
    physical = 64 << 20
    try:
        physical = int(pltpu.get_tpu_info().vmem_capacity_bytes)
    except Exception:
        pass
    return max(32 << 20, min(physical // 2, 64 << 20))


def _pick_channel_tile(C, N, DHW, itemsize, vmem_limit_bytes,
                       min_grid_steps=4):
    """Channel tile that (a) keeps the double-buffered working set inside the
    scoped-VMEM limit and (b) keeps the grid >= min_grid_steps so DMA-in /
    compute / DMA-out overlap and v7x can shard the axis across both TCs.

    Granularity is dtype-aware (sublane packing): 8 for 4-byte, 16 for 2-byte,
    32 for 1-byte dtypes.  The tile must be a granule multiple or the full C.
    """
    granule = max(8, 32 // itemsize)
    if C <= granule:
        return C                      # cannot tile finer than the full extent
    # Per-channel VMEM bytes: 4 I/O blocks double-buffered by the pipeline
    # plus ~2 block-sized f32 temporaries inside the kernel (x cast, xc/sq0).
    per_channel = N * DHW * (4 * 2 * itemsize + 2 * 4)
    budget = max(per_channel * granule, vmem_limit_bytes - (2 << 20))
    tc_budget = max(granule, (budget // per_channel) // granule * granule)
    # TODO(synk): if even one granule of channels overflows the budget (very
    # large N*D*H*W), switch to a two-pass sum/sumsq scheme over DHW tiles
    # instead of relying on the scoped-VMEM limit.
    tc_pipeline = _round_up(-(-C // min_grid_steps), granule)
    tc = min(tc_budget, tc_pipeline)
    if tc >= C:
        return C
    return tc


def ncomplex_batchnorm3d(in_real, in_im, gamma_r, beta_r, gamma_i, beta_i,
                         eps=1e-5):
    assert in_real.shape == in_im.shape
    N, C, D, H, W = in_real.shape
    DHW = D * H * W

    # NCDHW -> (N, C, DHW): free view of the contiguous buffer (no transpose).
    xr = in_real.reshape(N, C, DHW)
    xi = in_im.reshape(N, C, DHW)
    # Pack the four per-channel affine vectors into a single (C, 4) array so
    # each grid step does one tiny parameter DMA instead of four.
    params = jnp.stack(
        [gamma_r.astype(jnp.float32), beta_r.astype(jnp.float32),
         gamma_i.astype(jnp.float32), beta_i.astype(jnp.float32)], axis=1)

    itemsize = jnp.dtype(in_real.dtype).itemsize
    vmem_limit = _vmem_limit_bytes()
    tc = _pick_channel_tile(C, N, DHW, itemsize, vmem_limit)
    grid = (pl.cdiv(C, tc),)

    data_spec = pl.BlockSpec((N, tc, DHW), lambda i: (0, i, 0))
    par_spec = pl.BlockSpec((tc, 4), lambda i: (i, 0))

    out_r, out_i = pl.pallas_call(
        functools.partial(_complex_bn_kernel, eps=float(eps),
                          inv_count=1.0 / float(N * DHW)),
        out_shape=(jax.ShapeDtypeStruct((N, C, DHW), in_real.dtype),
                   jax.ShapeDtypeStruct((N, C, DHW), in_im.dtype)),
        grid=grid,
        in_specs=[data_spec, data_spec, par_spec],
        out_specs=(data_spec, data_spec),
        compiler_params=pltpu.CompilerParams(
            dimension_semantics=("parallel",),   # channel blocks independent
            vmem_limit_bytes=vmem_limit),
    )(xr, xi, params)

    # (N, C, DHW) -> NCDHW: free view again.
    return (out_r.reshape(N, C, D, H, W), out_i.reshape(N, C, D, H, W))


def _reference(in_real, in_im, gamma_r, beta_r, gamma_i, beta_i, eps=1e-5):
    def bn(x, g, b):
        x = x.astype(jnp.float32)
        mean = jnp.mean(x, axis=(0, 2, 3, 4), keepdims=True)
        var = jnp.mean((x - mean) ** 2, axis=(0, 2, 3, 4), keepdims=True)
        gg = g.reshape(1, -1, 1, 1, 1)
        bb = b.reshape(1, -1, 1, 1, 1)
        return (x - mean) / jnp.sqrt(var + eps) * gg + bb
    return bn(in_real, gamma_r, beta_r), bn(in_im, gamma_i, beta_i)


if __name__ == "__main__":
    key = jax.random.PRNGKey(0)

    # Two small configs: C=4 exercises the full-channel (single-block) path,
    # C=32 exercises the channel-tiled multi-step pipelined grid (tc=8, 4 steps).
    for (N, C, D, H, W) in [(2, 4, 4, 8, 8), (2, 32, 4, 8, 8)]:
        k1, k2, k3, k4, k5, k6 = jax.random.split(jax.random.fold_in(key, C), 6)

        in_real = jax.random.normal(k1, (N, C, D, H, W), dtype=jnp.float32)
        in_im = jax.random.normal(k2, (N, C, D, H, W), dtype=jnp.float32)

        # PyTorch default affine params are ones/zeros; perturb so the affine
        # path is actually exercised.
        gamma_r = 1.0 + 0.1 * jax.random.normal(k3, (C,), dtype=jnp.float32)
        beta_r = 0.1 * jax.random.normal(k4, (C,), dtype=jnp.float32)
        gamma_i = 1.0 + 0.1 * jax.random.normal(k5, (C,), dtype=jnp.float32)
        beta_i = 0.1 * jax.random.normal(k6, (C,), dtype=jnp.float32)

        out_r, out_i = ncomplex_batchnorm3d(in_real, in_im,
                                            gamma_r, beta_r, gamma_i, beta_i)
        jax.block_until_ready((out_r, out_i))

        ref_r, ref_i = _reference(in_real, in_im,
                                  gamma_r, beta_r, gamma_i, beta_i)
        assert out_r.shape == in_real.shape and out_i.shape == in_im.shape
        assert jnp.allclose(out_r, ref_r, rtol=1e-4, atol=1e-4)
        assert jnp.allclose(out_i, ref_i, rtol=1e-4, atol=1e-4)

    print("KERNEL_OK")
</pallas_src>

<mosaic_0001>
module attributes {stable_mosaic.version = 11 : i64} {
  func.func @_complex_bn_kernel(%arg0: i32, %arg1: memref<2x4x256xf32, #tpu.memory_space<vmem>>, %arg2: memref<2x4x256xf32, #tpu.memory_space<vmem>>, %arg3: memref<4x4xf32, #tpu.memory_space<vmem>>, %arg4: memref<2x4x256xf32, #tpu.memory_space<vmem>>, %arg5: memref<2x4x256xf32, #tpu.memory_space<vmem>>) attributes {dimension_semantics = [#tpu.dimension_semantics<parallel>], iteration_bounds = array<i64: 1>, scalar_prefetch = 0 : i64, scratch_operands = 0 : i64, tpu.core_type = #tpu.core_type<tc>, window_params = [{transform_indices = @transform_0, window_bounds = array<i64: 2, 4, 256>}, {transform_indices = @transform_1, window_bounds = array<i64: 2, 4, 256>}, {transform_indices = @transform_2, window_bounds = array<i64: 4, 4>}, {transform_indices = @transform_3, window_bounds = array<i64: 2, 4, 256>}, {transform_indices = @transform_4, window_bounds = array<i64: 2, 4, 256>}]} {
    %c0 = arith.constant 0 : index
    %c0_0 = arith.constant 0 : index
    %0 = vector.load %arg3[%c0, %c0_0] : memref<4x4xf32, #tpu.memory_space<vmem>>, vector<4x4xf32>
    %1 = vector.extract_strided_slice %0 {offsets = [0, 0], sizes = [4, 1], strides = [1, 1]} : vector<4x4xf32> to vector<4x1xf32>
    %2 = vector.extract_strided_slice %0 {offsets = [0, 1], sizes = [4, 1], strides = [1, 1]} : vector<4x4xf32> to vector<4x1xf32>
    %c0_1 = arith.constant 0 : index
    %c0_2 = arith.constant 0 : index
    %c0_3 = arith.constant 0 : index
    %3 = vector.load %arg1[%c0_1, %c0_2, %c0_3] : memref<2x4x256xf32, #tpu.memory_space<vmem>>, vector<2x4x256xf32>
    %cst = arith.constant dense<0.000000e+00> : vector<4x256xf32>
    %4 = vector.multi_reduction <add>, %3, %cst [0] : vector<2x4x256xf32> to vector<4x256xf32>
    %cst_4 = arith.constant dense<0.000000e+00> : vector<4xf32>
    %5 = vector.multi_reduction <add>, %4, %cst_4 [1] : vector<4x256xf32> to vector<4xf32>
    %6 = vector.shape_cast %5 : vector<4xf32> to vector<4x1xf32>
    %cst_5 = arith.constant 0.001953125 : f32
    %7 = vector.broadcast %cst_5 : f32 to vector<4x1xf32>
    %8 = arith.mulf %6, %7 : vector<4x1xf32>
    %9 = vector.shape_cast %8 : vector<4x1xf32> to vector<1x4x1xf32>
    %10 = vector.broadcast %9 : vector<1x4x1xf32> to vector<2x4x256xf32>
    %11 = arith.subf %3, %10 : vector<2x4x256xf32>
    %12 = arith.mulf %11, %11 : vector<2x4x256xf32>
    %cst_6 = arith.constant dense<0.000000e+00> : vector<4x256xf32>
    %13 = vector.multi_reduction <add>, %12, %cst_6 [0] : vector<2x4x256xf32> to vector<4x256xf32>
    %cst_7 = arith.constant dense<0.000000e+00> : vector<4xf32>
    %14 = vector.multi_reduction <add>, %13, %cst_7 [1] : vector<4x256xf32> to vector<4xf32>
    %15 = vector.shape_cast %14 : vector<4xf32> to vector<4x1xf32>
    %cst_8 = arith.constant 0.001953125 : f32
    %16 = vector.broadcast %cst_8 : f32 to vector<4x1xf32>
    %17 = arith.mulf %15, %16 : vector<4x1xf32>
    %18 = vector.shape_cast %17 : vector<4x1xf32> to vector<1x4x1xf32>
    %cst_9 = arith.constant 9.99999974E-6 : f32
    %19 = vector.broadcast %cst_9 : f32 to vector<1x4x1xf32>
    %20 = arith.addf %18, %19 : vector<1x4x1xf32>
    %21 = math.rsqrt %20 : vector<1x4x1xf32>
    %22 = vector.shape_cast %1 : vector<4x1xf32> to vector<1x4x1xf32>
    %23 = arith.mulf %21, %22 : vector<1x4x1xf32>
    %24 = vector.shape_cast %2 : vector<4x1xf32> to vector<1x4x1xf32>
    %25 = arith.mulf %9, %23 : vector<1x4x1xf32>
    %26 = arith.subf %24, %25 : vector<1x4x1xf32>
    %27 = vector.broadcast %23 : vector<1x4x1xf32> to vector<2x4x256xf32>
    %28 = arith.mulf %3, %27 : vector<2x4x256xf32>
    %29 = vector.broadcast %26 : vector<1x4x1xf32> to vector<2x4x256xf32>
    %30 = arith.addf %28, %29 : vector<2x4x256xf32>
    %c0_10 = arith.constant 0 : index
    %c0_11 = arith.constant 0 : index
    %c0_12 = arith.constant 0 : index
    %31 = vector.load %arg4[%c0_10, %c0_11, %c0_12] : memref<2x4x256xf32, #tpu.memory_space<vmem>>, vector<2x4x256xf32>
    tpu.vector_store %arg4[%c0_10, %c0_11, %c0_12], %30 {strides = array<i32>} : memref<2x4x256xf32, #tpu.memory_space<vmem>>, vector<2x4x256xf32>,
    %32 = vector.extract_strided_slice %0 {offsets = [0, 2], sizes = [4, 1], strides = [1, 1]} : vector<4x4xf32> to vector<4x1xf32>
    %33 = vector.extract_strided_slice %0 {offsets = [0, 3], sizes = [4, 1], strides = [1, 1]} : vector<4x4xf32> to vector<4x1xf32>
    %c0_13 = arith.constant 0 : index
    %c0_14 = arith.constant 0 : index
    %c0_15 = arith.constant 0 : index
    %34 = vector.load %arg2[%c0_13, %c0_14, %c0_15] : memref<2x4x256xf32, #tpu.memory_space<vmem>>, vector<2x4x256xf32>
    %cst_16 = arith.constant dense<0.000000e+00> : vector<4x256xf32>
    %35 = vector.multi_reduction <add>, %34, %cst_16 [0] : vector<2x4x256xf32> to vector<4x256xf32>
    %cst_17 = arith.constant dense<0.000000e+00> : vector<4xf32>
    %36 = vector.multi_reduction <add>, %35, %cst_17 [1] : vector<4x256xf32> to vector<4xf32>
    %37 = vector.shape_cast %36 : vector<4xf32> to vector<4x1xf32>
    %cst_18 = arith.constant 0.001953125 : f32
    %38 = vector.broadcast %cst_18 : f32 to vector<4x1xf32>
    %39 = arith.mulf %37, %38 : vector<4x1xf32>
    %40 = vector.shape_cast %39 : vector<4x1xf32> to vector<1x4x1xf32>
    %41 = vector.broadcast %40 : vector<1x4x1xf32> to vector<2x4x256xf32>
    %42 = arith.subf %34, %41 : vector<2x4x256xf32>
    %43 = arith.mulf %42, %42 : vector<2x4x256xf32>
    %cst_19 = arith.constant dense<0.000000e+00> : vector<4x256xf32>
    %44 = vector.multi_reduction <add>, %43, %cst_19 [0] : vector<2x4x256xf32> to vector<4x256xf32>
    %cst_20 = arith.constant dense<0.000000e+00> : vector<4xf32>
    %45 = vector.multi_reduction <add>, %44, %cst_20 [1] : vector<4x256xf32> to vector<4xf32>
    %46 = vector.shape_cast %45 : vector<4xf32> to vector<4x1xf32>
    %cst_21 = arith.constant 0.001953125 : f32
    %47 = vector.broadcast %cst_21 : f32 to vector<4x1xf32>
    %48 = arith.mulf %46, %47 : vector<4x1xf32>
    %49 = vector.shape_cast %48 : vector<4x1xf32> to vector<1x4x1xf32>
    %cst_22 = arith.constant 9.99999974E-6 : f32
    %50 = vector.broadcast %cst_22 : f32 to vector<1x4x1xf32>
    %51 = arith.addf %49, %50 : vector<1x4x1xf32>
    %52 = math.rsqrt %51 : vector<1x4x1xf32>
    %53 = vector.shape_cast %32 : vector<4x1xf32> to vector<1x4x1xf32>
    %54 = arith.mulf %52, %53 : vector<1x4x1xf32>
    %55 = vector.shape_cast %33 : vector<4x1xf32> to vector<1x4x1xf32>
    %56 = arith.mulf %40, %54 : vector<1x4x1xf32>
    %57 = arith.subf %55, %56 : vector<1x4x1xf32>
    %58 = vector.broadcast %54 : vector<1x4x1xf32> to vector<2x4x256xf32>
    %59 = arith.mulf %34, %58 : vector<2x4x256xf32>
    %60 = vector.broadcast %57 : vector<1x4x1xf32> to vector<2x4x256xf32>
    %61 = arith.addf %59, %60 : vector<2x4x256xf32>
    %c0_23 = arith.constant 0 : index
    %c0_24 = arith.constant 0 : index
    %c0_25 = arith.constant 0 : index
    %62 = vector.load %arg5[%c0_23, %c0_24, %c0_25] : memref<2x4x256xf32, #tpu.memory_space<vmem>>, vector<2x4x256xf32>
    tpu.vector_store %arg5[%c0_23, %c0_24, %c0_25], %61 {strides = array<i32>} : memref<2x4x256xf32, #tpu.memory_space<vmem>>, vector<2x4x256xf32>,
    return
  }
  func.func @transform_0(%arg0: i32) -> (i32, i32, i32) {
    %c0_i32 = arith.constant 0 : i32
    %c0_i32_0 = arith.constant 0 : i32
    %c0_i32_1 = arith.constant 0 : i32
    return %c0_i32, %arg0, %c0_i32_0 : i32, i32, i32
  }
  func.func @transform_1(%arg0: i32) -> (i32, i32, i32) {
    %c0_i32 = arith.constant 0 : i32
    %c0_i32_0 = arith.constant 0 : i32
    %c0_i32_1 = arith.constant 0 : i32
    return %c0_i32, %arg0, %c0_i32_0 : i32, i32, i32
  }
  func.func @transform_2(%arg0: i32) -> (i32, i32) {
    %c0_i32 = arith.constant 0 : i32
    %c0_i32_0 = arith.constant 0 : i32
    return %arg0, %c0_i32 : i32, i32
  }
  func.func @transform_3(%arg0: i32) -> (i32, i32, i32) {
    %c0_i32 = arith.constant 0 : i32
    %c0_i32_0 = arith.constant 0 : i32
    %c0_i32_1 = arith.constant 0 : i32
    return %c0_i32, %arg0, %c0_i32_0 : i32, i32, i32
  }
  func.func @transform_4(%arg0: i32) -> (i32, i32, i32) {
    %c0_i32 = arith.constant 0 : i32
    %c0_i32_0 = arith.constant 0 : i32
    %c0_i32_1 = arith.constant 0 : i32
    return %c0_i32, %arg0, %c0_i32_0 : i32, i32, i32
  }
}

</mosaic_0001>

<llo_original>
// kernel: tpu_custom_call.1
$region0: #{tpu_custom_call.1}
  #allocation0 [shape = 'u32[]', space=smem, size = 0x4, offset = 0x4, fixed_abs, tag = 'smem constant byte address 0x4 - core index']
  #allocation1 [shape = 'u32[144,128]{1,0:T(1,128)}', space=vmem, size = 0x12000, scoped, tag = 'internal scratch']
  %s0 = inlined_call_operand.hbm [shape: f32[2,4,256], index: 0, kind: input, shape index: {}]
  %s1 = inlined_call_operand.hbm [shape: f32[2,4,256], index: 1, kind: input, shape index: {}]
  %s2 = inlined_call_operand.vmem [shape: f32[4,4], index: 2, kind: input, shape index: {}]
  %s3 = inlined_call_operand.hbm [shape: f32[2,4,256], index: 3, kind: output, shape index: {0}]
  %s4 = inlined_call_operand.hbm [shape: f32[2,4,256], index: 4, kind: output, shape index: {1}]
  %5 = xla_tuple %s3, %s4
  %s6 = sld [smem:[#allocation0]]
  $region38: #{tpu_custom_call.1} parent=0
    _
  %s8 = ssub.s32 1, %s6
  %s9 = scalar_select 0, %s8, %s6
  $region1: #{tpu_custom_call.1} parent=0
    #allocation2 [shape = 'u8[8192]{0}', space=vmem, size = 0x2000, scoped, tag = 'input window, operand 0, single buffered']
    #allocation3 [shape = 's32[1]{0}', space=sflag, size = 0x4, scoped, tag = 'scoped memory for tpu_custom_call.1']
    #allocation4 [shape = 's32[1]{0}', space=sflag, size = 0x4, scoped, tag = 'scoped memory for tpu_custom_call.1']
    #allocation5 [shape = 'u8[8192]{0}', space=vmem, size = 0x2000, scoped, tag = 'input window, operand 1, single buffered']
    #allocation6 [shape = 's32[1]{0}', space=sflag, size = 0x4, scoped, tag = 'scoped memory for tpu_custom_call.1']
    #allocation7 [shape = 'u8[8192]{0}', space=vmem, size = 0x2000, scoped, tag = 'output window, operand 0, single buffered']
    #allocation8 [shape = 'u8[8192]{0}', space=vmem, size = 0x2000, scoped, tag = 'output window, operand 1, single buffered']
    #allocation9 [shape = 's32[1]{0}', space=sflag, size = 0x4, scoped, tag = 'scoped memory for tpu_custom_call.1']
    %10 = vsyncpa [#allocation3], 0
    %11 = vsyncpa [#allocation6], 0
    %12 = vsyncpa [#allocation4], 0
    %13 = vsyncpa [#allocation9], 0
    // Predicated region
    $region2: #{tpu_custom_call.1} parent=1 // pred_check
      _
    $region3: #{tpu_custom_call.1} parent=1 // pred_check_branch
      %15 = sbr.rel (0) target = $region5
    $region4: #{tpu_custom_call.1} parent=1 // pred_region
      %s17 = ssub.s32 256, 256
      %18 = vsyncadd [#allocation3], %s17
      %s19 = sshll.u32 [#allocation2], 4
      %s20 = int_to_ptr.vmem [resolvable:$true] %s19
      %25 = dma.hbm_to_vmem [thread:$0]  %s0, 256, %s20, [#allocation3], 128, 128, 8
    $region5: #{tpu_custom_call.1} parent=1 // pred_fallthru
      _
    // Predicated region
    $region6: #{tpu_custom_call.1} parent=1 // pred_check
      _
    $region7: #{tpu_custom_call.1} parent=1 // pred_check_branch
      %27 = sbr.rel (0) target = $region9
    $region8: #{tpu_custom_call.1} parent=1 // pred_region
      %s29 = ssub.s32 256, 256
      %30 = vsyncadd [#allocation6], %s29
      %s31 = sshll.u32 [#allocation5], 4
      %s32 = int_to_ptr.vmem [resolvable:$true] %s31
      %37 = dma.hbm_to_vmem [thread:$0]  %s1, 256, %s32, [#allocation6], 128, 128, 8
    $region9: #{tpu_custom_call.1} parent=1 // pred_fallthru
      _
    // Predicated region
    $region10: #{tpu_custom_call.1} parent=1 // pred_check
      _
    $region11: #{tpu_custom_call.1} parent=1 // pred_check_branch
      %39 = sbr.rel (0) target = $region13
    $region12: #{tpu_custom_call.1} parent=1 // pred_region
      _
    $region13: #{tpu_custom_call.1} parent=1 // pred_fallthru
      _
    // Predicated region
    $region14: #{tpu_custom_call.1} parent=1 // pred_check
      _
    $region15: #{tpu_custom_call.1} parent=1 // pred_check_branch
      %41 = sbr.rel (0) target = $region17
    $region16: #{tpu_custom_call.1} parent=1 // pred_region
      %42 = dma.done [#allocation3], 256
    $region17: #{tpu_custom_call.1} parent=1 // pred_fallthru
      _
    // Predicated region
    $region18: #{tpu_custom_call.1} parent=1 // pred_check
      _
    $region19: #{tpu_custom_call.1} parent=1 // pred_check_branch
      %44 = sbr.rel (0) target = $region21
    $region20: #{tpu_custom_call.1} parent=1 // pred_region
      %45 = dma.done [#allocation6], 256
    $region21: #{tpu_custom_call.1} parent=1 // pred_fallthru
      _
    %v46 = vld [vmem:[%s2] sm:$0xf]
    %v47 = vld [vmem:[#allocation2] sm:$0xff]
    %v48 = vld [vmem:[#allocation2 + $0x8] sm:$0xff]
    %v51 = vcombine.high %v47, %v47
    %v52 = vcombine.high %v48, %v48
    %vm55 = vcmask 1043456
    %v56 = vsel %vm55, %v47, 0.0
    %v57 = vsel %vm55, %v48, 0.0
    %v58 = vadd.f32 %v56, %v57
    %v59 = vsel %vm55, %v51, 0.0
    %v60 = vsel %vm55, %v52, 0.0
    %v61 = vadd.f32 %v59, %v60
    %v62 = vsel %vm55, %v58, 0.0
    %v63 = vsel %vm55, %v61, 0.0
    %v64 = vadd.f32 %v62, %v63
    %65 = vadd.xlane.f32.xlu0 %v64
    %v66 = vpop.xlane.xlu0 %65
    %v67 = vmul.f32 %v66, 0.001953125
    %v70 = vunpack.c.l.s4 839922192
    %v71 = vunpack.c.0.s8 %v70
    %v72 = vlaneseq
    %v73 = vshrl.u32 %v72, 7
    %v74 = vsub.s32 %v71, %v73
    %v75 = vrot.slane %v67, %v74
    %v77 = vsub.f32 %v47, %v75
    %v78 = vsub.f32 %v48, %v75
    %v79 = vmul.f32 %v77, %v77
    %v80 = vmul.f32 %v78, %v78
    %v83 = vcombine.high %v79, %v79
    %v84 = vcombine.high %v80, %v80
    %v87 = vsel %vm55, %v79, 0.0
    %v88 = vsel %vm55, %v80, 0.0
    %v89 = vadd.f32 %v87, %v88
    %v90 = vsel %vm55, %v83, 0.0
    %v91 = vsel %vm55, %v84, 0.0
    %v92 = vadd.f32 %v90, %v91
    %v93 = vsel %vm55, %v89, 0.0
    %v94 = vsel %vm55, %v92, 0.0
    %v95 = vadd.f32 %v93, %v94
    %96 = vadd.xlane.f32.xlu0 %v95
    %v97 = vpop.xlane.xlu0 %96
    %v98 = vmul.f32 %v97, 0.001953125
    %v99 = vadd.f32 %v98, 1e-05
    %v100 = vrsqrt.pop %v99
    %v101 = vmul.f32 %v100, %v46
    %v102 = vmul.f32 %v67, %v101
    %104 = vrot.lane.b32.xlu0 %v102, 1
    %v105 = vpop.permute.xlu0 %104
    %v107 = vsub.f32 %v46, %v105
    %109 = vset.pattern.permute.xlu0 0
    %110 = vperm.xlu0 %109, %v101
    %v111 = vpop.permute.xlu0 %110
    %v113 = vunpack.c.l.s4 839922192
    %v114 = vunpack.c.0.s8 %v113
    %v115 = vlaneseq
    %v116 = vshrl.u32 %v115, 7
    %v117 = vsub.s32 %v114, %v116
    %v118 = vrot.slane %v111, %v117
    %v120 = vmul.f32 %v47, %v118
    %v121 = vmul.f32 %v48, %v118
    %123 = vset.pattern.permute.xlu0 1
    %124 = vperm.xlu0 %123, %v107
    %v125 = vpop.permute.xlu0 %124
    %v127 = vunpack.c.l.s4 839922192
    %v128 = vunpack.c.0.s8 %v127
    %v129 = vlaneseq
    %v130 = vshrl.u32 %v129, 7
    %v131 = vsub.s32 %v128, %v130
    %v132 = vrot.slane %v125, %v131
    %v134 = vadd.f32 %v120, %v132
    %v135 = vadd.f32 %v121, %v132
    %136 = vst [vmem:[#allocation7] sm:$0xff] %v134
    %137 = vst [vmem:[#allocation7 + $0x8] sm:$0xff] %v135
    %v138 = vld [vmem:[#allocation5] sm:$0xff]
    %v139 = vld [vmem:[#allocation5 + $0x8] sm:$0xff]
    %v142 = vcombine.high %v138, %v138
    %v143 = vcombine.high %v139, %v139
    %v146 = vsel %vm55, %v138, 0.0
    %v147 = vsel %vm55, %v139, 0.0
    %v148 = vadd.f32 %v146, %v147
    %v149 = vsel %vm55, %v142, 0.0
    %v150 = vsel %vm55, %v143, 0.0
    %v151 = vadd.f32 %v149, %v150
    %v152 = vsel %vm55, %v148, 0.0
    %v153 = vsel %vm55, %v151, 0.0
    %v154 = vadd.f32 %v152, %v153
    %155 = vadd.xlane.f32.xlu0 %v154
    %v156 = vpop.xlane.xlu0 %155
    %v157 = vmul.f32 %v156, 0.001953125
    %v160 = vunpack.c.l.s4 839922192
    %v161 = vunpack.c.0.s8 %v160
    %v162 = vlaneseq
    %v163 = vshrl.u32 %v162, 7
    %v164 = vsub.s32 %v161, %v163
    %v165 = vrot.slane %v157, %v164
    %v167 = vsub.f32 %v138, %v165
    %v168 = vsub.f32 %v139, %v165
    %v169 = vmul.f32 %v167, %v167
    %v170 = vmul.f32 %v168, %v168
    %v173 = vcombine.high %v169, %v169
    %v174 = vcombine.high %v170, %v170
    %v177 = vsel %vm55, %v169, 0.0
    %v178 = vsel %vm55, %v170, 0.0
    %v179 = vadd.f32 %v177, %v178
    %v180 = vsel %vm55, %v173, 0.0
    %v181 = vsel %vm55, %v174, 0.0
    %v182 = vadd.f32 %v180, %v181
    %v183 = vsel %vm55, %v179, 0.0
    %v184 = vsel %vm55, %v182, 0.0
    %v185 = vadd.f32 %v183, %v184
    %186 = vadd.xlane.f32.xlu0 %v185
    %v187 = vpop.xlane.xlu0 %186
    %v188 = vmul.f32 %v187, 0.001953125
    %v189 = vadd.f32 %v188, 1e-05
    %v190 = vrsqrt.pop %v189
    %v191 = vmul.f32 %v190, %v46
    %v192 = vmul.f32 %v157, %v191
    %194 = vrot.lane.b32.xlu0 %v192, 1
    %v195 = vpop.permute.xlu0 %194
    %v197 = vsub.f32 %v46, %v195
    %199 = vset.pattern.permute.xlu0 2
    %200 = vperm.xlu0 %199, %v191
    %v201 = vpop.permute.xlu0 %200
    %v203 = vunpack.c.l.s4 839922192
    %v204 = vunpack.c.0.s8 %v203
    %v205 = vlaneseq
    %v206 = vshrl.u32 %v205, 7
    %v207 = vsub.s32 %v204, %v206
    %v208 = vrot.slane %v201, %v207
    %v210 = vmul.f32 %v138, %v208
    %v211 = vmul.f32 %v139, %v208
    %213 = vset.pattern.permute.xlu0 3
    %214 = vperm.xlu0 %213, %v197
    %v215 = vpop.permute.xlu0 %214
    %v217 = vunpack.c.l.s4 839922192
    %v218 = vunpack.c.0.s8 %v217
    %v219 = vlaneseq
    %v220 = vshrl.u32 %v219, 7
    %v221 = vsub.s32 %v218, %v220
    %v222 = vrot.slane %v215, %v221
    %v224 = vadd.f32 %v210, %v222
    %v225 = vadd.f32 %v211, %v222
    %226 = vst [vmem:[#allocation8] sm:$0xff] %v224
    %227 = vst [vmem:[#allocation8 + $0x8] sm:$0xff] %v225
    // Predicated region
    $region22: #{tpu_custom_call.1} parent=1 // pred_check
      _
    $region23: #{tpu_custom_call.1} parent=1 // pred_check_branch
      %229 = sbr.rel (0) target = $region25
    $region24: #{tpu_custom_call.1} parent=1 // pred_region
      %s231 = ssub.s32 256, 256
      %232 = vsyncadd [#allocation4], %s231
      %s233 = sshll.u32 [#allocation7], 4
      %s234 = int_to_ptr.vmem [resolvable:$true] %s233
      %239 = dma.vmem_to_hbm [thread:$0]  %s234, 256, %s3, [#allocation4], 128, 128, 8
    $region25: #{tpu_custom_call.1} parent=1 // pred_fallthru
      _
    // Predicated region
    $region26: #{tpu_custom_call.1} parent=1 // pred_check
      _
    $region27: #{tpu_custom_call.1} parent=1 // pred_check_branch
      %241 = sbr.rel (0) target = $region29
    $region28: #{tpu_custom_call.1} parent=1 // pred_region
      %s243 = ssub.s32 256, 256
      %244 = vsyncadd [#allocation9], %s243
      %s245 = sshll.u32 [#allocation8], 4
      %s246 = int_to_ptr.vmem [resolvable:$true] %s245
      %251 = dma.vmem_to_hbm [thread:$0]  %s246, 256, %s4, [#allocation9], 128, 128, 8
    $region29: #{tpu_custom_call.1} parent=1 // pred_fallthru
      _
    // Predicated region
    $region30: #{tpu_custom_call.1} parent=1 // pred_check
      _
    $region31: #{tpu_custom_call.1} parent=1 // pred_check_branch
      %253 = sbr.rel (0) target = $region33
    $region32: #{tpu_custom_call.1} parent=1 // pred_region
      %254 = dma.done [#allocation4], 256
    $region33: #{tpu_custom_call.1} parent=1 // pred_fallthru
      _
    // Predicated region
    $region34: #{tpu_custom_call.1} parent=1 // pred_check
      _
    $region35: #{tpu_custom_call.1} parent=1 // pred_check_branch
      %256 = sbr.rel (0) target = $region37
    $region36: #{tpu_custom_call.1} parent=1 // pred_region
      %257 = dma.done [#allocation9], 256
    $region37: #{tpu_custom_call.1} parent=1 // pred_fallthru
      _
    %258 = vsyncpa [#allocation3], 1
    %259 = vsyncpa [#allocation6], 1
    %260 = vsyncpa [#allocation4], 1
    %261 = vsyncpa [#allocation9], 1

</llo_original>
